<compile_context>
chip_gen: v7x
topology: tpu7x:2x2x1
jax: 0.10.0
libtpu: 0.0.40
codegen_flags: <defaults>
</compile_context>

<pallas_src>
import functools

import jax
import jax.numpy as jnp
from jax import lax
from jax.experimental import pallas as pl
from jax.experimental.pallas import tpu as pltpu


def _backwarp_kernel(grid_ref, img_ref, flow_ref, out_ref, *, H, W, C):
    """One (batch n, pixel-tile t) step.

    grid_ref : (2, Pt)       gridX / gridY for this tile of output pixels
    img_ref  : (1, C*H, W)   full source image (resident across the t axis)
    flow_ref : (1, 2, Pt)    flow tile
    out_ref  : (1, C, Pt)    output tile (lane-dense)
    """
    Pt = out_ref.shape[-1]

    g = grid_ref[...]                       # (2, Pt)
    gx = g[0:1, :]                          # (1, Pt)
    gy = g[1:2, :]
    fl = flow_ref[...]                      # (1, 2, Pt)
    u = fl[0, 0:1, :]                       # (1, Pt)
    v = fl[0, 1:2, :]

    # grid_sample(align_corners=False) normalize->unnormalize == 0.5-pixel shift.
    ix = gx + u - 0.5
    iy = gy + v - 0.5

    ix0 = jnp.floor(ix)
    iy0 = jnp.floor(iy)
    wx1 = ix - ix0
    wx0 = 1.0 - wx1
    wy1 = iy - iy0
    wy0 = 1.0 - wy1

    # Clip only to keep the int32 cast safe; out-of-range corners keep an index
    # that never matches the iota compare -> zero contribution == zeros padding.
    ix0i = jnp.clip(ix0, -2.0, float(W)).astype(jnp.int32)     # (1, Pt)
    iy0i = jnp.clip(iy0, -2.0, float(H)).astype(jnp.int32)

    iota_w = lax.broadcasted_iota(jnp.int32, (W, Pt), 0)
    iota_h = lax.broadcasted_iota(jnp.int32, (H, Pt), 0)

    # Separable weighted one-hot slabs (source column / source row on sublanes,
    # output pixel on lanes).
    wx_slab = ((iota_w == ix0i).astype(jnp.float32) * wx0
               + (iota_w == ix0i + 1).astype(jnp.float32) * wx1)    # (W, Pt)
    wy_slab = ((iota_h == iy0i).astype(jnp.float32) * wy0
               + (iota_h == iy0i + 1).astype(jnp.float32) * wy1)    # (H, Pt)

    # x-gather + x-lerp for every (c, h) row in one MXU matmul.
    img2d = img_ref[...][0].astype(jnp.float32)                     # (C*H, W)
    inter = jnp.dot(img2d, wx_slab, preferred_element_type=jnp.float32)  # (C*H, Pt)

    # y-gather + y-lerp: per-channel weighted reduction over source rows.
    rows = []
    for c in range(C):                                              # C is tiny, static
        blk = inter[c * H:(c + 1) * H, :]                           # (H, Pt)
        rows.append(jnp.sum(blk * wy_slab, axis=0, keepdims=True))  # (1, Pt)
    out2d = jnp.concatenate(rows, axis=0)                           # (C, Pt)
    out_ref[...] = out2d[None, :, :].astype(out_ref.dtype)


def _pick_tile_pixels(HW, H, W, C, budget_bytes=8 * 1024 * 1024):
    """Largest pixel tile (multiple of 128) whose per-step slab footprint fits."""
    hw_pad128 = max(128, ((HW + 127) // 128) * 128)
    # wx/wy slabs + intermediate (with headroom) + small temporaries, all f32.
    per_lane_bytes = 4 * (W + H + 2 * C * H + 16)
    pt = 128
    for cand in (2048, 1024, 512, 256, 128):
        if per_lane_bytes * cand <= budget_bytes:
            pt = cand
            break
    return min(pt, hw_pad128)


def backwarp(img, flow, *, tile_pixels=None):
    """I0 = backwarp(I1=img, F_0_1=flow).  img: (N,C,H,W), flow: (N,2,H,W)."""
    N, C, H, W = img.shape
    assert flow.shape == (N, 2, H, W)
    HW = H * W

    if tile_pixels is None:
        tile_pixels = _pick_tile_pixels(HW, H, W, C)
    Pt = int(tile_pixels)
    if Pt % 128 != 0:
        raise ValueError(f"tile_pixels={Pt} must be a multiple of 128")
    HW_pad = ((HW + Pt - 1) // Pt) * Pt
    num_tiles = HW_pad // Pt

    # Free (bit-identical) reshapes to the kernel-friendly layouts.
    img_rows = img.reshape(N, C * H, W)          # (N, C*H, W)
    flow_flat = flow.reshape(N, 2, HW)           # (N, 2, HW)

    # gridX / gridY buffers (module state in the PyTorch class), flattened.
    gx = jnp.broadcast_to(jnp.arange(W, dtype=jnp.float32)[None, :], (H, W)).reshape(HW)
    gy = jnp.broadcast_to(jnp.arange(H, dtype=jnp.float32)[:, None], (H, W)).reshape(HW)
    grid_xy = jnp.stack([gx, gy], axis=0)        # (2, HW)

    if HW_pad != HW:
        pad = HW_pad - HW
        flow_flat = jnp.pad(flow_flat, ((0, 0), (0, 0), (0, pad)))
        grid_xy = jnp.pad(grid_xy, ((0, 0), (0, pad)))

    kernel = functools.partial(_backwarp_kernel, H=H, W=W, C=C)
    out_flat = pl.pallas_call(
        kernel,
        out_shape=jax.ShapeDtypeStruct((N, C, HW_pad), img.dtype),
        grid=(N, num_tiles),
        in_specs=[
            pl.BlockSpec((2, Pt), lambda n, t: (0, t)),           # gridX/gridY tile
            pl.BlockSpec((1, C * H, W), lambda n, t: (n, 0, 0)),  # image, resident over t
            pl.BlockSpec((1, 2, Pt), lambda n, t: (n, 0, t)),     # flow tile
        ],
        out_specs=pl.BlockSpec((1, C, Pt), lambda n, t: (n, 0, t)),
        compiler_params=pltpu.CompilerParams(
            dimension_semantics=("parallel", "parallel"),
            vmem_limit_bytes=32 * 1024 * 1024,
        ),
    )(grid_xy, img_rows, flow_flat)
    return out_flat[..., :HW].reshape(N, C, H, W)


def _backwarp_ref(img, flow):
    """Pure-JAX reference (bilinear grid_sample, zeros padding, align_corners=False)."""
    N, C, H, W = img.shape
    HW = H * W
    u = flow[:, 0]
    v = flow[:, 1]
    gx = jnp.arange(W, dtype=jnp.float32)[None, None, :]
    gy = jnp.arange(H, dtype=jnp.float32)[None, :, None]
    ix = gx + u - 0.5
    iy = gy + v - 0.5
    ix0 = jnp.floor(ix)
    iy0 = jnp.floor(iy)
    ix1 = ix0 + 1.0
    iy1 = iy0 + 1.0
    wx1 = ix - ix0
    wx0 = 1.0 - wx1
    wy1 = iy - iy0
    wy0 = 1.0 - wy1
    img_flat = img.reshape(N, C, HW)

    def corner(ix_c, iy_c, w_c):
        valid = ((ix_c >= 0.0) & (ix_c <= W - 1.0) &
                 (iy_c >= 0.0) & (iy_c <= H - 1.0))
        w = jnp.where(valid, w_c, 0.0)
        ixi = jnp.clip(ix_c, 0.0, W - 1.0).astype(jnp.int32)
        iyi = jnp.clip(iy_c, 0.0, H - 1.0).astype(jnp.int32)
        flat = (iyi * W + ixi).reshape(N, 1, HW)
        vals = jnp.take_along_axis(
            img_flat, jnp.broadcast_to(flat, (N, C, HW)), axis=2)
        return vals * w.reshape(N, 1, HW)

    out = (corner(ix0, iy0, wx0 * wy0) + corner(ix1, iy0, wx1 * wy0) +
           corner(ix0, iy1, wx0 * wy1) + corner(ix1, iy1, wx1 * wy1))
    return out.reshape(N, C, H, W)


if __name__ == "__main__":
    # Case 1: module-consistent small shape; tile_pixels=128 -> 2 pixel tiles.
    N, C, H, W = 2, 4, 16, 16
    key = jax.random.PRNGKey(0)
    k_img, k_flow = jax.random.split(key)
    img = jax.random.uniform(k_img, (N, C, H, W), dtype=jnp.float32)
    # Displacements of a few pixels; some samples land out of bounds to exercise
    # the zero-padding path.
    flow = 3.0 * jax.random.normal(k_flow, (N, 2, H, W), dtype=jnp.float32)

    out = jax.block_until_ready(backwarp(img, flow, tile_pixels=128))
    ref = _backwarp_ref(img, flow)
    if not jnp.allclose(out, ref, atol=1e-5, rtol=1e-5):
        raise AssertionError("Pallas backwarp does not match reference (case 1)")

    # Case 2: HW not a multiple of 128 -> exercises the padded-tile path.
    N2, C2, H2, W2 = 1, 3, 8, 24
    k_img2, k_flow2 = jax.random.split(jax.random.PRNGKey(0))
    img2 = jax.random.uniform(k_img2, (N2, C2, H2, W2), dtype=jnp.float32)
    flow2 = 2.0 * jax.random.normal(k_flow2, (N2, 2, H2, W2), dtype=jnp.float32)
    out2 = jax.block_until_ready(backwarp(img2, flow2))
    ref2 = _backwarp_ref(img2, flow2)
    if not jnp.allclose(out2, ref2, atol=1e-5, rtol=1e-5):
        raise AssertionError("Pallas backwarp does not match reference (case 2)")

    print("KERNEL_OK")
</pallas_src>

<mosaic_0001>
module attributes {stable_mosaic.version = 11 : i64} {
  func.func @_backwarp_kernel(%arg0: i32, %arg1: i32, %arg2: memref<2x128xf32, #tpu.memory_space<vmem>>, %arg3: memref<1x64x16xf32, #tpu.memory_space<vmem>>, %arg4: memref<1x2x128xf32, #tpu.memory_space<vmem>>, %arg5: memref<1x4x128xf32, #tpu.memory_space<vmem>>) attributes {dimension_semantics = [#tpu.dimension_semantics<parallel>, #tpu.dimension_semantics<parallel>], iteration_bounds = array<i64: 2, 2>, scalar_prefetch = 0 : i64, scratch_operands = 0 : i64, tpu.core_type = #tpu.core_type<tc>, window_params = [{transform_indices = @transform_0, window_bounds = array<i64: 2, 128>}, {transform_indices = @transform_1, window_bounds = array<i64: 1, 64, 16>}, {transform_indices = @transform_2, window_bounds = array<i64: 1, 2, 128>}, {transform_indices = @transform_3, window_bounds = array<i64: 1, 4, 128>}]} {
    %c0 = arith.constant 0 : index
    %c0_0 = arith.constant 0 : index
    %0 = vector.load %arg2[%c0, %c0_0] : memref<2x128xf32, #tpu.memory_space<vmem>>, vector<2x128xf32>
    %1 = vector.extract_strided_slice %0 {offsets = [0, 0], sizes = [1, 128], strides = [1, 1]} : vector<2x128xf32> to vector<1x128xf32>
    %2 = vector.extract_strided_slice %0 {offsets = [1, 0], sizes = [1, 128], strides = [1, 1]} : vector<2x128xf32> to vector<1x128xf32>
    %c0_1 = arith.constant 0 : index
    %c0_2 = arith.constant 0 : index
    %c0_3 = arith.constant 0 : index
    %3 = vector.load %arg4[%c0_1, %c0_2, %c0_3] : memref<1x2x128xf32, #tpu.memory_space<vmem>>, vector<1x2x128xf32>
    %4 = vector.extract_strided_slice %3 {offsets = [0, 0, 0], sizes = [1, 1, 128], strides = [1, 1, 1]} : vector<1x2x128xf32> to vector<1x1x128xf32>
    %5 = vector.shape_cast %4 : vector<1x1x128xf32> to vector<1x128xf32>
    %6 = vector.extract_strided_slice %3 {offsets = [0, 1, 0], sizes = [1, 1, 128], strides = [1, 1, 1]} : vector<1x2x128xf32> to vector<1x1x128xf32>
    %7 = vector.shape_cast %6 : vector<1x1x128xf32> to vector<1x128xf32>
    %8 = arith.addf %1, %5 : vector<1x128xf32>
    %cst = arith.constant 5.000000e-01 : f32
    %9 = vector.broadcast %cst : f32 to vector<1x128xf32>
    %10 = arith.subf %8, %9 : vector<1x128xf32>
    %11 = arith.addf %2, %7 : vector<1x128xf32>
    %cst_4 = arith.constant 5.000000e-01 : f32
    %12 = vector.broadcast %cst_4 : f32 to vector<1x128xf32>
    %13 = arith.subf %11, %12 : vector<1x128xf32>
    %14 = math.floor %10 : vector<1x128xf32>
    %15 = math.floor %13 : vector<1x128xf32>
    %16 = arith.subf %10, %14 : vector<1x128xf32>
    %cst_5 = arith.constant 1.000000e+00 : f32
    %17 = vector.broadcast %cst_5 : f32 to vector<1x128xf32>
    %18 = arith.subf %17, %16 : vector<1x128xf32>
    %19 = arith.subf %13, %15 : vector<1x128xf32>
    %cst_6 = arith.constant 1.000000e+00 : f32
    %20 = vector.broadcast %cst_6 : f32 to vector<1x128xf32>
    %21 = arith.subf %20, %19 : vector<1x128xf32>
    %cst_7 = arith.constant -2.000000e+00 : f32
    %cst_8 = arith.constant 1.600000e+01 : f32
    %22 = vector.broadcast %cst_7 : f32 to vector<1x128xf32>
    %23 = arith.maximumf %22, %14 : vector<1x128xf32>
    %24 = vector.broadcast %cst_8 : f32 to vector<1x128xf32>
    %25 = arith.minimumf %24, %23 : vector<1x128xf32>
    %26 = arith.fptosi %25 : vector<1x128xf32> to vector<1x128xi32>
    %cst_9 = arith.constant -2.000000e+00 : f32
    %cst_10 = arith.constant 1.600000e+01 : f32
    %27 = vector.broadcast %cst_9 : f32 to vector<1x128xf32>
    %28 = arith.maximumf %27, %15 : vector<1x128xf32>
    %29 = vector.broadcast %cst_10 : f32 to vector<1x128xf32>
    %30 = arith.minimumf %29, %28 : vector<1x128xf32>
    %31 = arith.fptosi %30 : vector<1x128xf32> to vector<1x128xi32>
    %32 = tpu.iota {dimensions = array<i32: 0>} : vector<16x128xi32>
    %33 = tpu.iota {dimensions = array<i32: 0>} : vector<16x128xi32>
    %34 = vector.broadcast %26 : vector<1x128xi32> to vector<16x128xi32>
    %35 = arith.cmpi eq, %32, %34 : vector<16x128xi32>
    %36 = arith.extui %35 : vector<16x128xi1> to vector<16x128xi32>
    %37 = arith.sitofp %36 : vector<16x128xi32> to vector<16x128xf32>
    %38 = vector.broadcast %18 : vector<1x128xf32> to vector<16x128xf32>
    %39 = arith.mulf %37, %38 : vector<16x128xf32>
    %c1_i32 = arith.constant 1 : i32
    %40 = vector.broadcast %c1_i32 : i32 to vector<1x128xi32>
    %41 = arith.addi %26, %40 : vector<1x128xi32>
    %42 = vector.broadcast %41 : vector<1x128xi32> to vector<16x128xi32>
    %43 = arith.cmpi eq, %32, %42 : vector<16x128xi32>
    %44 = arith.extui %43 : vector<16x128xi1> to vector<16x128xi32>
    %45 = arith.sitofp %44 : vector<16x128xi32> to vector<16x128xf32>
    %46 = vector.broadcast %16 : vector<1x128xf32> to vector<16x128xf32>
    %47 = arith.mulf %45, %46 : vector<16x128xf32>
    %48 = arith.addf %39, %47 : vector<16x128xf32>
    %49 = vector.broadcast %31 : vector<1x128xi32> to vector<16x128xi32>
    %50 = arith.cmpi eq, %33, %49 : vector<16x128xi32>
    %51 = arith.extui %50 : vector<16x128xi1> to vector<16x128xi32>
    %52 = arith.sitofp %51 : vector<16x128xi32> to vector<16x128xf32>
    %53 = vector.broadcast %21 : vector<1x128xf32> to vector<16x128xf32>
    %54 = arith.mulf %52, %53 : vector<16x128xf32>
    %c1_i32_11 = arith.constant 1 : i32
    %55 = vector.broadcast %c1_i32_11 : i32 to vector<1x128xi32>
    %56 = arith.addi %31, %55 : vector<1x128xi32>
    %57 = vector.broadcast %56 : vector<1x128xi32> to vector<16x128xi32>
    %58 = arith.cmpi eq, %33, %57 : vector<16x128xi32>
    %59 = arith.extui %58 : vector<16x128xi1> to vector<16x128xi32>
    %60 = arith.sitofp %59 : vector<16x128xi32> to vector<16x128xf32>
    %61 = vector.broadcast %19 : vector<1x128xf32> to vector<16x128xf32>
    %62 = arith.mulf %60, %61 : vector<16x128xf32>
    %63 = arith.addf %54, %62 : vector<16x128xf32>
    %c0_12 = arith.constant 0 : index
    %c0_13 = arith.constant 0 : index
    %c0_14 = arith.constant 0 : index
    %64 = vector.load %arg3[%c0_12, %c0_13, %c0_14] : memref<1x64x16xf32, #tpu.memory_space<vmem>>, vector<1x64x16xf32>
    %65 = vector.shape_cast %64 : vector<1x64x16xf32> to vector<64x16xf32>
    %cst_15 = arith.constant dense<0.000000e+00> : vector<64x128xf32>
    %66 = tpu.matmul %65, %48, %cst_15 {dimension_numbers = #tpu.dot_dimension_numbers<[1], [0], [0], [1], [0, 0, 1, 1], [], []>} : vector<64x16xf32>, vector<16x128xf32>, vector<64x128xf32> -> vector<64x128xf32>
    %67 = vector.extract_strided_slice %66 {offsets = [0, 0], sizes = [16, 128], strides = [1, 1]} : vector<64x128xf32> to vector<16x128xf32>
    %68 = arith.mulf %67, %63 : vector<16x128xf32>
    %cst_16 = arith.constant dense<0.000000e+00> : vector<128xf32>
    %69 = vector.multi_reduction <add>, %68, %cst_16 [0] : vector<16x128xf32> to vector<128xf32>
    %70 = vector.shape_cast %69 : vector<128xf32> to vector<1x128xf32>
    %71 = vector.extract_strided_slice %66 {offsets = [16, 0], sizes = [16, 128], strides = [1, 1]} : vector<64x128xf32> to vector<16x128xf32>
    %72 = arith.mulf %71, %63 : vector<16x128xf32>
    %cst_17 = arith.constant dense<0.000000e+00> : vector<128xf32>
    %73 = vector.multi_reduction <add>, %72, %cst_17 [0] : vector<16x128xf32> to vector<128xf32>
    %74 = vector.shape_cast %73 : vector<128xf32> to vector<1x128xf32>
    %75 = vector.extract_strided_slice %66 {offsets = [32, 0], sizes = [16, 128], strides = [1, 1]} : vector<64x128xf32> to vector<16x128xf32>
    %76 = arith.mulf %75, %63 : vector<16x128xf32>
    %cst_18 = arith.constant dense<0.000000e+00> : vector<128xf32>
    %77 = vector.multi_reduction <add>, %76, %cst_18 [0] : vector<16x128xf32> to vector<128xf32>
    %78 = vector.shape_cast %77 : vector<128xf32> to vector<1x128xf32>
    %79 = vector.extract_strided_slice %66 {offsets = [48, 0], sizes = [16, 128], strides = [1, 1]} : vector<64x128xf32> to vector<16x128xf32>
    %80 = arith.mulf %79, %63 : vector<16x128xf32>
    %cst_19 = arith.constant dense<0.000000e+00> : vector<128xf32>
    %81 = vector.multi_reduction <add>, %80, %cst_19 [0] : vector<16x128xf32> to vector<128xf32>
    %82 = vector.shape_cast %81 : vector<128xf32> to vector<1x128xf32>
    %83 = tpu.concatenate %70, %74, %78, %82 in 0 : vector<1x128xf32>, vector<1x128xf32>, vector<1x128xf32>, vector<1x128xf32> -> vector<4x128xf32>
    %84 = vector.shape_cast %83 : vector<4x128xf32> to vector<1x4x128xf32>
    %c0_20 = arith.constant 0 : index
    %c0_21 = arith.constant 0 : index
    %c0_22 = arith.constant 0 : index
    %85 = vector.load %arg5[%c0_20, %c0_21, %c0_22] : memref<1x4x128xf32, #tpu.memory_space<vmem>>, vector<1x4x128xf32>
    tpu.vector_store %arg5[%c0_20, %c0_21, %c0_22], %84 {strides = array<i32>} : memref<1x4x128xf32, #tpu.memory_space<vmem>>, vector<1x4x128xf32>,
    return
  }
  func.func @transform_0(%arg0: i32, %arg1: i32) -> (i32, i32) {
    %c0_i32 = arith.constant 0 : i32
    %c0_i32_0 = arith.constant 0 : i32
    return %c0_i32, %arg1 : i32, i32
  }
  func.func @transform_1(%arg0: i32, %arg1: i32) -> (i32, i32, i32) {
    %c0_i32 = arith.constant 0 : i32
    %c0_i32_0 = arith.constant 0 : i32
    %c0_i32_1 = arith.constant 0 : i32
    return %arg0, %c0_i32, %c0_i32_0 : i32, i32, i32
  }
  func.func @transform_2(%arg0: i32, %arg1: i32) -> (i32, i32, i32) {
    %c0_i32 = arith.constant 0 : i32
    %c0_i32_0 = arith.constant 0 : i32
    return %arg0, %c0_i32, %arg1 : i32, i32, i32
  }
  func.func @transform_3(%arg0: i32, %arg1: i32) -> (i32, i32, i32) {
    %c0_i32 = arith.constant 0 : i32
    %c0_i32_0 = arith.constant 0 : i32
    return %arg0, %c0_i32, %arg1 : i32, i32, i32
  }
}

</mosaic_0001>

<llo_original>
// kernel: tpu_custom_call.1
$region0: #{tpu_custom_call.1}
  #allocation0 [shape = 'u32[]', space=smem, size = 0x4, offset = 0x4, fixed_abs, tag = 'smem constant byte address 0x4 - core index']
  #allocation1 [shape = 'u32[144,128]{1,0:T(1,128)}', space=vmem, size = 0x12000, scoped, tag = 'internal scratch']
  %s0 = inlined_call_operand.vmem [shape: f32[2,256], index: 0, kind: input, shape index: {}]
  %s1 = inlined_call_operand.vmem [shape: f32[2,64,16], index: 1, kind: input, shape index: {}]
  %s2 = inlined_call_operand.vmem [shape: f32[2,2,256], index: 2, kind: input, shape index: {}]
  %s3 = inlined_call_operand.hbm [shape: f32[2,4,256], index: 3, kind: output, shape index: {}]
  %s4 = sld [smem:[#allocation0]]
  $region45: #{tpu_custom_call.1} parent=0
    _
  %s6 = ssub.s32 1, %s4
  %s7 = scalar_select 0, %s6, %s4
  $region1: #{tpu_custom_call.1} parent=0
    #allocation2 [shape = 'u8[4096]{0}', space=vmem, size = 0x1000, scoped, tag = 'output window, operand 0']
    #allocation3 [shape = 's32[2]{0}', space=sflag, size = 0x8, scoped, tag = 'scoped memory for tpu_custom_call.1']
    %8 = vsyncpa [#allocation3], 0
    %s9 = scalar_lea.sflag [#allocation3], 1
    %10 = vsyncpa %s9, 0
    loop: start=0, step=1, limit=6
    $region2: #{tpu_custom_call.1} parent=1 // loop_pre_header
      _
    $region3: #{tpu_custom_call.1} parent=1 // loop_header
      %s12 = sphi 0, %s16
      %p13 = scmp.ge.s32.totalorder %s12, 6
      %s19 = sphi 0, %s31
      %s20 = sphi 0, %s27
      %s21 = sphi 0, %s19
      %s22 = sphi 0, %s20
      %s23 = sphi 0, %s21
      %s24 = sphi 0, %s22
      %s34 = sphi 0, %s36
      %s37 = sphi 0, %s34
      %s38 = sphi 0, %s37
      %s54 = sphi 0, %s38
      %s60 = sphi 0, %s62
      %s63 = sphi 0, %s60
      %s64 = sphi 0, %s63
      %s80 = sphi 0, %s64
      %s88 = sphi 0, %s90
      %s91 = sphi 0, %s88
      %s92 = sphi 0, %s91
      %s108 = sphi 0, %s92
      %s116 = sphi 0, %s118
      %s119 = sphi 0, %s116
      %s120 = sphi 0, %s119
      %s136 = sphi 0, %s120
    $region4: #{tpu_custom_call.1} parent=1 // loop_header_branch
      %15 = sbr.rel (%p13) target = $region8
    $region5: #{tpu_custom_call.1} parent=1 // loop_body
      %s17 = ssub.s32 %s12, 1
      %s18 = ssub.s32 %s12, 2
      %s25 = sadd.s32 1, %s20
      %p26 = scmp.ge.s32.totalorder %s25, 2
      %s27 = scalar_select %p26, 0, %s25
      %s28 = sadd.s32 1, %s19
      %s29 = scalar_select %p26, %s28, %s19
      %p30 = scmp.ge.s32.totalorder %s29, 2
      %s31 = scalar_select %p30, 0, %s29
      %s32 = ssub.s32 %s20, %s27
      %p33 = scmp.eq.s32.totalorder %s32, 0
      %s35 = sadd.s32 %s34, 1
      %s36 = scalar_select %p33, %s34, %s35
      %p39 = pneg %p33
      %p40 = scmp.eq.s32.totalorder %s12, 3
      %p41 = por %p39, %p40
      %p42 = scmp.ne.s32.totalorder %s34, %s37
      %p43 = scmp.eq.s32.totalorder %s12, 0
      %p44 = por %p42, %p43
      %p45 = scmp.ne.s32.totalorder %s34, %s37
      %p46 = scmp.eq.s32.totalorder %s17, 3
      %p47 = por %p45, %p46
      %p48 = scmp.ne.s32.totalorder %s37, %s38
      %p49 = scmp.eq.s32.totalorder %s17, 0
      %p50 = por %p48, %p49
      %p51 = scmp.ne.s32.totalorder %s37, %s38
      %p52 = scmp.eq.s32.totalorder %s18, 3
      %p53 = por %p51, %p52
      %p55 = scmp.ne.s32.totalorder %s38, %s54
      %p56 = scmp.eq.s32.totalorder %s18, 0
      %p57 = por %p55, %p56
      %s58 = ssub.s32 %s19, %s31
      %p59 = scmp.eq.s32.totalorder %s58, 0
      %s61 = sadd.s32 %s60, 1
      %s62 = scalar_select %p59, %s60, %s61
      %p65 = pneg %p59
      %p66 = scmp.eq.s32.totalorder %s12, 3
      %p67 = por %p65, %p66
      %p68 = scmp.ne.s32.totalorder %s60, %s63
      %p69 = scmp.eq.s32.totalorder %s12, 0
      %p70 = por %p68, %p69
      %p71 = scmp.ne.s32.totalorder %s60, %s63
      %p72 = scmp.eq.s32.totalorder %s17, 3
      %p73 = por %p71, %p72
      %p74 = scmp.ne.s32.totalorder %s63, %s64
      %p75 = scmp.eq.s32.totalorder %s17, 0
      %p76 = por %p74, %p75
      %p77 = scmp.ne.s32.totalorder %s63, %s64
      %p78 = scmp.eq.s32.totalorder %s18, 3
      %p79 = por %p77, %p78
      %p81 = scmp.ne.s32.totalorder %s64, %s80
      %p82 = scmp.eq.s32.totalorder %s18, 0
      %p83 = por %p81, %p82
      %s84 = ssub.s32 %s19, %s31
      %s85 = ssub.s32 %s20, %s27
      %s86 = sor.u32 %s84, %s85
      %p87 = scmp.eq.s32.totalorder %s86, 0
      %s89 = sadd.s32 %s88, 1
      %s90 = scalar_select %p87, %s88, %s89
      %p93 = pneg %p87
      %p94 = scmp.eq.s32.totalorder %s12, 3
      %p95 = por %p93, %p94
      %p96 = scmp.ne.s32.totalorder %s88, %s91
      %p97 = scmp.eq.s32.totalorder %s12, 0
      %p98 = por %p96, %p97
      %p99 = scmp.ne.s32.totalorder %s88, %s91
      %p100 = scmp.eq.s32.totalorder %s17, 3
      %p101 = por %p99, %p100
      %p102 = scmp.ne.s32.totalorder %s91, %s92
      %p103 = scmp.eq.s32.totalorder %s17, 0
      %p104 = por %p102, %p103
      %p105 = scmp.ne.s32.totalorder %s91, %s92
      %p106 = scmp.eq.s32.totalorder %s18, 3
      %p107 = por %p105, %p106
      %p109 = scmp.ne.s32.totalorder %s92, %s108
      %p110 = scmp.eq.s32.totalorder %s18, 0
      %p111 = por %p109, %p110
      %s112 = ssub.s32 %s19, %s31
      %s113 = ssub.s32 %s20, %s27
      %s114 = sor.u32 %s112, %s113
      %p115 = scmp.eq.s32.totalorder %s114, 0
      %s117 = sadd.s32 %s116, 1
      %s118 = scalar_select %p115, %s116, %s117
      %p121 = pneg %p115
      %p122 = scmp.eq.s32.totalorder %s12, 3
      %p123 = por %p121, %p122
      %p124 = scmp.ne.s32.totalorder %s116, %s119
      %p125 = scmp.eq.s32.totalorder %s12, 0
      %p126 = por %p124, %p125
      %p127 = scmp.ne.s32.totalorder %s116, %s119
      %p128 = scmp.eq.s32.totalorder %s17, 3
      %p129 = por %p127, %p128
      %p130 = scmp.ne.s32.totalorder %s119, %s120
      %p131 = scmp.eq.s32.totalorder %s17, 0
      %p132 = por %p130, %p131
      %p133 = scmp.ne.s32.totalorder %s119, %s120
      %p134 = scmp.eq.s32.totalorder %s18, 3
      %p135 = por %p133, %p134
      %p137 = scmp.ne.s32.totalorder %s120, %s136
      %p138 = scmp.eq.s32.totalorder %s18, 0
      %p139 = por %p137, %p138
      %p140 = scmp.le.s32.totalorder 1, %s12
      %p141 = scmp.lt.s32.totalorder %s12, 5
      %p142 = pnand %p140, %p141
      %p143 = pneg %p142
      // Predicated region
      $region9: #{tpu_custom_call.1} parent=5 // pred_check
        _
      $region10: #{tpu_custom_call.1} parent=5 // pred_check_branch
        %145 = sbr.rel (%p142) target = $region12
      $region11: #{tpu_custom_call.1} parent=5 // pred_region
        %s146 = ssub.s32 %s12, 1
      $region12: #{tpu_custom_call.1} parent=5 // pred_fallthru
        _
      %p147 = scmp.lt.s32.totalorder %s12, 4
      // Predicated region
      $region13: #{tpu_custom_call.1} parent=5 // pred_check
        %p148 = pneg %p147
      $region14: #{tpu_custom_call.1} parent=5 // pred_check_branch
        %150 = sbr.rel (%p148) target = $region16
      $region15: #{tpu_custom_call.1} parent=5 // pred_region
        // Predicated region
        $region17: #{tpu_custom_call.1} parent=15 // pred_check
          %p151 = pneg %p44
        $region18: #{tpu_custom_call.1} parent=15 // pred_check_branch
          %153 = sbr.rel (%p151) target = $region20
        $region19: #{tpu_custom_call.1} parent=15 // pred_region
          %p154 = scmp.lt.s32.totalorder %s20, 1
          %s155 = scalar_select %p154, %s20, 1
          %s156 = smul.addr %s155, 2
          %s157 = scalar_lea.vmem %s0, %s156
        $region20: #{tpu_custom_call.1} parent=15 // pred_fallthru
          _
        // Predicated region
        $region21: #{tpu_custom_call.1} parent=15 // pred_check
          %p158 = pneg %p70
        $region22: #{tpu_custom_call.1} parent=15 // pred_check_branch
          %160 = sbr.rel (%p158) target = $region24
        $region23: #{tpu_custom_call.1} parent=15 // pred_region
          %p161 = scmp.lt.s32.totalorder %s19, 1
          %s162 = scalar_select %p161, %s19, 1
          %s163 = smul.addr %s162, 8
          %s164 = smul.addr %s163, 8
          %s165 = scalar_lea.vmem %s1, %s164
        $region24: #{tpu_custom_call.1} parent=15 // pred_fallthru
          _
        // Predicated region
        $region25: #{tpu_custom_call.1} parent=15 // pred_check
          %p166 = pneg %p98
        $region26: #{tpu_custom_call.1} parent=15 // pred_check_branch
          %168 = sbr.rel (%p166) target = $region28
        $region27: #{tpu_custom_call.1} parent=15 // pred_region
          %p169 = scmp.lt.s32.totalorder %s19, 1
          %s170 = scalar_select %p169, %s19, 1
          %p171 = scmp.lt.s32.totalorder %s20, 1
          %s172 = scalar_select %p171, %s20, 1
          %s173 = smul.addr %s170, 2
          %s174 = sadd.s32 %s172, %s173
          %s175 = smul.addr %s174, 2
          %s176 = scalar_lea.vmem %s2, %s175
        $region28: #{tpu_custom_call.1} parent=15 // pred_fallthru
          _
      $region16: #{tpu_custom_call.1} parent=5 // pred_fallthru
        _
      %p177 = scmp.le.s32.totalorder 1, %s12
      %p178 = scmp.lt.s32.totalorder %s12, 5
      %p179 = pnand %p177, %p178
      %p180 = pneg %p179
      // Predicated region
      $region29: #{tpu_custom_call.1} parent=5 // pred_check
        _
      $region30: #{tpu_custom_call.1} parent=5 // pred_check_branch
        %182 = sbr.rel (%p179) target = $region32
      $region31: #{tpu_custom_call.1} parent=5 // pred_region
        %s183 = ssub.s32 %s12, 1
        %p184 = scmp.lt.s32.totalorder %s22, 1
        %s185 = scalar_select %p184, %s22, 1
        %s186 = smul.addr %s185, 2
        %s187 = scalar_lea.vmem %s0, %s186
        %p188 = pneg %p50
        %p189 = pneg %p47
        %p190 = scmp.lt.s32.totalorder %s21, 1
        %s191 = scalar_select %p190, %s21, 1
        %s192 = smul.addr %s191, 8
        %s193 = smul.addr %s192, 8
        %s194 = scalar_lea.vmem %s1, %s193
        %p195 = pneg %p76
        %p196 = pneg %p73
        %p197 = scmp.lt.s32.totalorder %s21, 1
        %s198 = scalar_select %p197, %s21, 1
        %p199 = scmp.lt.s32.totalorder %s22, 1
        %s200 = scalar_select %p199, %s22, 1
        %s201 = smul.addr %s198, 2
        %s202 = sadd.s32 %s200, %s201
        %s203 = smul.addr %s202, 2
        %s204 = scalar_lea.vmem %s2, %s203
        %p205 = pneg %p104
        %p206 = pneg %p101
        %p207 = pneg %p132
        %p208 = pneg %p129
        %s209 = sand.u32 %s119, 1
        %s210 = scalar_lea.sflag [#allocation3], %s209
        %s211 = sand.u32 %s119, 1
        %s212 = smul.addr %s211, 4
        %s213 = scalar_lea.vmem [#allocation2], %s212
        %p214 = scmp.lt.s32.totalorder %s22, 1
        %s215 = scalar_select %p214, %s22, 1
        %s216 = smul.addr %s215, 2
        %s217 = scalar_lea.vmem %s0, %s216
        %p218 = scmp.lt.s32.totalorder %s21, 1
        %s219 = scalar_select %p218, %s21, 1
        %s220 = smul.addr %s219, 8
        %s221 = smul.addr %s220, 8
        %s222 = scalar_lea.vmem %s1, %s221
        %p223 = scmp.lt.s32.totalorder %s21, 1
        %s224 = scalar_select %p223, %s21, 1
        %p225 = scmp.lt.s32.totalorder %s22, 1
        %s226 = scalar_select %p225, %s22, 1
        %s227 = smul.addr %s224, 2
        %s228 = sadd.s32 %s226, %s227
        %s229 = smul.addr %s228, 2
        %s230 = scalar_lea.vmem %s2, %s229
        %v231 = vld [vmem:[%s217] sm:$0x3]
        %v232 = vld [vmem:[%s230] sm:$0x3]
        %v233 = vadd.f32 %v231, %v232
        %v234 = vsub.f32 %v233, 0.5
        %v235 = vfloor.f32 %v234
        %v236 = vsub.f32 %v234, %v235
        %v237 = vsub.f32 1.0, %v236
        %v238 = vmax.f32 %v235, -2.0
        %v239 = vmin.f32 %v238, 16.0
        %v240 = vcvt.f32.s32.to.zero.pseudo %v239
        %v241 = vlaneseq
        %v242 = vshrl.u32 %v241, 7
        %v243 = vadd.s32 %v242, 8
        %v244 = vlaneseq
        %v245 = vshrl.u32 %v244, 7
        %v246 = vsub.s32 0, %v245
        %v247 = vrot.slane %v240, %v246
        %vm248 = vcmp.eq.s32.totalorder %v242, %v247
        %vm249 = vcmp.eq.s32.totalorder %v243, %v247
        %v250 = vsel %vm248, 1, 0
        %v251 = vsel %vm249, 1, 0
        %v252 = vcvt.s32.f32 %v250
        %v253 = vcvt.s32.f32 %v251
        %v254 = vlaneseq
        %v255 = vshrl.u32 %v254, 7
        %v256 = vsub.s32 0, %v255
        %v257 = vrot.slane %v237, %v256
        %v258 = vmul.f32 %v252, %v257
        %v259 = vmul.f32 %v253, %v257
        %v260 = vadd.s32 %v240, 1
        %v261 = vlaneseq
        %v262 = vshrl.u32 %v261, 7
        %v263 = vsub.s32 0, %v262
        %v264 = vrot.slane %v260, %v263
        %vm265 = vcmp.eq.s32.totalorder %v242, %v264
        %vm266 = vcmp.eq.s32.totalorder %v243, %v264
        %v267 = vsel %vm265, 1, 0
        %v268 = vsel %vm266, 1, 0
        %v269 = vcvt.s32.f32 %v267
        %v270 = vcvt.s32.f32 %v268
        %v271 = vlaneseq
        %v272 = vshrl.u32 %v271, 7
        %v273 = vsub.s32 0, %v272
        %v274 = vrot.slane %v236, %v273
        %v275 = vmul.f32 %v269, %v274
        %v276 = vmul.f32 %v270, %v274
        %v277 = vadd.f32 %v258, %v275
        %v278 = vadd.f32 %v259, %v276
        %v279 = vlaneseq
        %v280 = vshrl.u32 %v279, 7
        %v281 = vsub.s32 1, %v280
        %v282 = vrot.slane %v240, %v281
        %vm283 = vcmp.eq.s32.totalorder %v242, %v282
        %vm284 = vcmp.eq.s32.totalorder %v243, %v282
        %v285 = vsel %vm283, 1, 0
        %v286 = vsel %vm284, 1, 0
        %v287 = vcvt.s32.f32 %v285
        %v288 = vcvt.s32.f32 %v286
        %v289 = vlaneseq
        %v290 = vshrl.u32 %v289, 7
        %v291 = vsub.s32 1, %v290
        %v292 = vrot.slane %v237, %v291
        %v293 = vmul.f32 %v287, %v292
        %v294 = vmul.f32 %v288, %v292
        %v295 = vlaneseq
        %v296 = vshrl.u32 %v295, 7
        %v297 = vsub.s32 1, %v296
        %v298 = vrot.slane %v260, %v297
        %vm299 = vcmp.eq.s32.totalorder %v242, %v298
        %vm300 = vcmp.eq.s32.totalorder %v243, %v298
        %v301 = vsel %vm299, 1, 0
        %v302 = vsel %vm300, 1, 0
        %v303 = vcvt.s32.f32 %v301
        %v304 = vcvt.s32.f32 %v302
        %v305 = vlaneseq
        %v306 = vshrl.u32 %v305, 7
        %v307 = vsub.s32 1, %v306
        %v308 = vrot.slane %v236, %v307
        %v309 = vmul.f32 %v303, %v308
        %v310 = vmul.f32 %v304, %v308
        %v311 = vadd.f32 %v293, %v309
        %v312 = vadd.f32 %v294, %v310
        %v313 = vld [vmem:[%s222] sm:$0xff]
        %v314 = vld [vmem:[%s222 + $0x8] sm:$0xff]
        %v315 = vld [vmem:[%s222 + $0x10] sm:$0xff]
        %v316 = vld [vmem:[%s222 + $0x18] sm:$0xff]
        %v317 = vld [vmem:[%s222 + $0x20] sm:$0xff]
        %v318 = vld [vmem:[%s222 + $0x28] sm:$0xff]
        %v319 = vld [vmem:[%s222 + $0x30] sm:$0xff]
        %v320 = vld [vmem:[%s222 + $0x38] sm:$0xff]
        %vm321 = vcmask 130048
        %v323 = vsel %vm321, %v313, 0
        %v326 = vsel %vm321, %v314, 0
        %v329 = vsel %vm321, %v315, 0
        %v332 = vsel %vm321, %v316, 0
        %v335 = vsel %vm321, %v317, 0
        %v338 = vsel %vm321, %v318, 0
        %v341 = vsel %vm321, %v319, 0
        %v344 = vsel %vm321, %v320, 0
        %346 = vmatprep.subr.mxu0 0.0
        %347 = vmatpush1.msra.mxu0 %v277
        %348 = vmatprep.subr.mxu0 0.0
        %349 = vmatpush1.msra.mxu0 %v278
        %350 = vmatprep.subr.mxu0 0.0
        %351 = vmatpush1.msra.mxu0 0.0
        %352 = vmatprep.subr.mxu0 0.0
        %353 = vmatpush1.msra.mxu0 0.0
        %354 = vmatprep.subr.mxu0 0.0
        %355 = vmatpush1.msra.mxu0 0.0
        %356 = vmatprep.subr.mxu0 0.0
        %357 = vmatpush1.msra.mxu0 0.0
        %358 = vmatprep.subr.mxu0 0.0
        %359 = vmatpush1.msra.mxu0 0.0
        %360 = vmatprep.subr.mxu0 0.0
        %361 = vmatpush1.msra.mxu0 0.0
        %362 = vmatprep.subr.mxu0 0.0
        %363 = vmatpush1.msra.mxu0 0.0
        %364 = vmatprep.subr.mxu0 0.0
        %365 = vmatpush1.msra.mxu0 0.0
        %366 = vmatprep.subr.mxu0 0.0
        %367 = vmatpush1.msra.mxu0 0.0
        %368 = vmatprep.subr.mxu0 0.0
        %369 = vmatpush1.msra.mxu0 0.0
        %370 = vmatprep.subr.mxu0 0.0
        %371 = vmatpush1.msra.mxu0 0.0
        %372 = vmatprep.subr.mxu0 0.0
        %373 = vmatpush1.msra.mxu0 0.0
        %374 = vmatprep.subr.mxu0 0.0
        %375 = vmatpush1.msra.mxu0 0.0
        %376 = vmatprep.subr.mxu0 0.0
        %377 = vmatpush1.msra.mxu0 0.0
        %378 = vmatprep.subr.mxu0 0.0
        %379 = vmatpush1.msra.mxu0 0.0
        %380 = vmatprep.subr.mxu0 0.0
        %381 = vmatpush1.msra.mxu0 0.0
        %382 = vmatprep.subr.mxu0 0.0
        %383 = vmatpush1.msra.mxu0 0.0
        %384 = vmatprep.subr.mxu0 0.0
        %385 = vmatpush1.msra.mxu0 0.0
        %386 = vmatprep.subr.mxu0 0.0
        %387 = vmatpush1.msra.mxu0 0.0
        %388 = vmatprep.subr.mxu0 0.0
        %389 = vmatpush1.msra.mxu0 0.0
        %390 = vmatprep.subr.mxu0 0.0
        %391 = vmatpush1.msra.mxu0 0.0
        %392 = vmatprep.subr.mxu0 0.0
        %393 = vmatpush1.msra.mxu0 0.0
        %394 = vmatprep.subr.mxu0 0.0
        %395 = vmatpush1.msra.mxu0 0.0
        %396 = vmatprep.subr.mxu0 0.0
        %397 = vmatpush1.msra.mxu0 0.0
        %398 = vmatprep.subr.mxu0 0.0
        %399 = vmatpush1.msra.mxu0 0.0
        %400 = vmatprep.subr.mxu0 0.0
        %401 = vmatpush1.msra.mxu0 0.0
        %402 = vmatprep.subr.mxu0 0.0
        %403 = vmatpush1.msra.mxu0 0.0
        %404 = vmatprep.subr.mxu0 0.0
        %405 = vmatpush1.msra.mxu0 0.0
        %406 = vmatprep.subr.mxu0 0.0
        %407 = vmatpush1.msra.mxu0 0.0
        %408 = vmatprep.subr.mxu0 0.0
        %409 = vmatpush1.msra.mxu0 0.0
        %410 = vmatprep.mubr.f32.mxu0 0.0
        %411 = vmatmul.mubr.f32.gmra.mrb[0].mxu0 %v323
        %v412 = vpop.f32.mrb[0].mxu0
        %v413 = vadd.f32 0.0, %v412
        %v414 = vpop.f32.mrb[0].mxu0
        %415 = vmatprep.mubr.f32.mxu0 0.0
        %416 = vmatmul.mubr.f32.gmra.mrb[0].mxu0 %v326
        %v417 = vpop.f32.mrb[0].mxu0
        %v418 = vadd.f32 0.0, %v417
        %v419 = vpop.f32.mrb[0].mxu0
        %420 = vmatprep.mubr.f32.mxu0 0.0
        %421 = vmatmul.mubr.f32.gmra.mrb[0].mxu0 %v329
        %v422 = vpop.f32.mrb[0].mxu0
        %v423 = vadd.f32 0.0, %v422
        %v424 = vpop.f32.mrb[0].mxu0
        %425 = vmatprep.mubr.f32.mxu0 0.0
        %426 = vmatmul.mubr.f32.gmra.mrb[0].mxu0 %v332
        %v427 = vpop.f32.mrb[0].mxu0
        %v428 = vadd.f32 0.0, %v427
        %v429 = vpop.f32.mrb[0].mxu0
        %430 = vmatprep.mubr.f32.mxu0 0.0
        %431 = vmatmul.mubr.f32.gmra.mrb[0].mxu0 %v335
        %v432 = vpop.f32.mrb[0].mxu0
        %v433 = vadd.f32 0.0, %v432
        %v434 = vpop.f32.mrb[0].mxu0
        %435 = vmatprep.mubr.f32.mxu0 0.0
        %436 = vmatmul.mubr.f32.gmra.mrb[0].mxu0 %v338
        %v437 = vpop.f32.mrb[0].mxu0
        %v438 = vadd.f32 0.0, %v437
        %v439 = vpop.f32.mrb[0].mxu0
        %440 = vmatprep.mubr.f32.mxu0 0.0
        %441 = vmatmul.mubr.f32.gmra.mrb[0].mxu0 %v341
        %v442 = vpop.f32.mrb[0].mxu0
        %v443 = vadd.f32 0.0, %v442
        %v444 = vpop.f32.mrb[0].mxu0
        %445 = vmatprep.mubr.f32.mxu0 0.0
        %446 = vmatmul.mubr.f32.gmra.mrb[0].mxu0 %v344
        %v447 = vpop.f32.mrb[0].mxu0
        %v448 = vadd.f32 0.0, %v447
        %v449 = vpop.f32.mrb[0].mxu0
        %450 = vdwg.mxu0
        %v451 = vmul.f32 %v413, %v311
        %v452 = vmul.f32 %v418, %v312
        %v453 = vadd.f32 %v451, %v452
        %v454 = vrot.slane %v453, 4
        %v455 = vadd.f32 %v453, %v454
        %v456 = vrot.slane %v455, 2
        %v457 = vadd.f32 %v455, %v456
        %v458 = vrot.slane %v457, 1
        %v459 = vadd.f32 %v457, %v458
        %v460 = vmul.f32 %v423, %v311
        %v461 = vmul.f32 %v428, %v312
        %v462 = vadd.f32 %v460, %v461
        %v463 = vrot.slane %v462, 4
        %v464 = vadd.f32 %v462, %v463
        %v465 = vrot.slane %v464, 2
        %v466 = vadd.f32 %v464, %v465
        %v467 = vrot.slane %v466, 1
        %v468 = vadd.f32 %v466, %v467
        %v469 = vmul.f32 %v433, %v311
        %v470 = vmul.f32 %v438, %v312
        %v471 = vadd.f32 %v469, %v470
        %v472 = vrot.slane %v471, 4
        %v473 = vadd.f32 %v471, %v472
        %v474 = vrot.slane %v473, 2
        %v475 = vadd.f32 %v473, %v474
        %v476 = vrot.slane %v475, 1
        %v477 = vadd.f32 %v475, %v476
        %v478 = vmul.f32 %v443, %v311
        %v479 = vmul.f32 %v448, %v312
        %v480 = vadd.f32 %v478, %v479
        %v481 = vrot.slane %v480, 4
        %v482 = vadd.f32 %v480, %v481
        %v483 = vrot.slane %v482, 2
        %v484 = vadd.f32 %v482, %v483
        %v485 = vrot.slane %v484, 1
        %v486 = vadd.f32 %v484, %v485
        %vm487 = vcmask 1040384
        %v488 = vsel %vm487, %v459, %v468
        %vm489 = vcmask 1041408
        %v490 = vsel %vm489, %v488, %v477
        %vm491 = vcmask 1042432
        %v492 = vsel %vm491, %v490, %v486
        %493 = vst [vmem:[%s213] sm:$0xf] %v492
        %s494 = sand.u32 %s119, 1
        %s495 = scalar_lea.sflag [#allocation3], %s494
        %s496 = sand.u32 %s119, 1
        %s497 = smul.addr %s496, 4
        %s498 = scalar_lea.vmem [#allocation2], %s497
        // Predicated region
        $region33: #{tpu_custom_call.1} parent=31 // pred_check
          %p499 = pneg %p129
        $region34: #{tpu_custom_call.1} parent=31 // pred_check_branch
          %501 = sbr.rel (%p499) target = $region36
        $region35: #{tpu_custom_call.1} parent=31 // pred_region
          %s503 = ssub.s32 64, 64
          %504 = vsyncadd %s495, %s503
          %s505 = smul.addr %s21, 2
          %s506 = sadd.s32 %s22, %s505
          %s507 = smul.addr %s506, 64
          %s508 = scalar_lea.hbm %s3, %s507
          %s510 = sshll.u32 %s498, 4
          %s511 = int_to_ptr.vmem [resolvable:$true] %s510
          %513 = dma.vmem_to_hbm [thread:$0]  %s511, 64, %s508, %s495
        $region36: #{tpu_custom_call.1} parent=31 // pred_fallthru
          _
      $region32: #{tpu_custom_call.1} parent=5 // pred_fallthru
        _
      %p514 = scmp.le.s32.totalorder 2, %s12
      // Predicated region
      $region37: #{tpu_custom_call.1} parent=5 // pred_check
        %p515 = pneg %p514
      $region38: #{tpu_custom_call.1} parent=5 // pred_check_branch
        %517 = sbr.rel (%p515) target = $region40
      $region39: #{tpu_custom_call.1} parent=5 // pred_region
        %s518 = ssub.s32 %s12, 2
        // Predicated region
        $region41: #{tpu_custom_call.1} parent=39 // pred_check
          %p519 = pneg %p135
        $region42: #{tpu_custom_call.1} parent=39 // pred_check_branch
          %521 = sbr.rel (%p519) target = $region44
        $region43: #{tpu_custom_call.1} parent=39 // pred_region
          %s522 = sand.u32 %s120, 1
          %s523 = scalar_lea.sflag [#allocation3], %s522
          %s524 = sand.u32 %s120, 1
          %s525 = smul.addr %s524, 4
          %s526 = scalar_lea.vmem [#allocation2], %s525
          %527 = dma.done %s523, 64
        $region44: #{tpu_custom_call.1} parent=39 // pred_fallthru
          _
      $region40: #{tpu_custom_call.1} parent=5 // pred_fallthru
        _
    $region6: #{tpu_custom_call.1} parent=1 // loop_footer
      %s16 = sadd.s32 1, %s12
    $region7: #{tpu_custom_call.1} parent=1 // loop_footer_branch
      %11 = sbr.rel target = $region3
    $region8: #{tpu_custom_call.1} parent=1 // loop_exit
      _
    %528 = vsyncpa [#allocation3], 1
    %s529 = scalar_lea.sflag [#allocation3], 1
    %530 = vsyncpa %s529, 1

</llo_original>
